<compile_context>
chip_gen: v7x
topology: tpu7x:2x2x1
jax: 0.10.0
libtpu: 0.0.40
codegen_flags: <defaults>
</compile_context>

<pallas_src>
import jax
import jax.numpy as jnp
from jax import lax
from jax.experimental import pallas as pl
from jax.experimental.pallas import tpu as pltpu


# ---- tiling policy ----------------------------------------------------------
_X_STREAM_BUDGET = 12 * 1024 * 1024   # bytes for the double-buffered input stream(s);
                                      # conservative across v5e (16 MiB default scoped
                                      # VMEM), v6e, and v7x (64 MiB physical).
_TM_MIN, _TM_MAX = 256, 2048
_LANE = 128
_SUBLANE = 8


def _round_up(x, m):
    return ((x + m - 1) // m) * m


def _round_down(x, m):
    return (x // m) * m


def _choose_tiles(B, H, itemsize, mask_streamed, budget):
    """Pick (tm, tk).  tk == H means no K (reduction) grid axis."""
    streams = 2 if mask_streamed else 1          # x (+ dropout mask)
    per_cell = 2 * streams * itemsize            # double-buffered input streams

    raw_tm = _round_down(budget // max(1, per_cell * H), _SUBLANE)

    if raw_tm >= _TM_MIN or H % _LANE != 0:
        # Single K tile covering all of H (the common case).  If H is not
        # lane-divisible it cannot be split legally, so accept the larger tile
        # and rely on vmem_limit_bytes being raised to match.
        tm = max(_TM_MIN, min(_TM_MAX, raw_tm))
        tk = H
    else:
        # H too wide for a >=256-row batch tile: keep tm at 256 and split the
        # contraction into a K grid axis (accumulator scratch) instead of
        # shrinking the batch tile.  Keeps each DMA large; matters most on v7x.
        tm = _TM_MIN
        tk = _round_down(budget // max(1, per_cell * tm), _LANE)
        tk = max(_LANE, min(tk, H))
        while H % tk != 0:                       # keep K tiles exact (no padded K blocks)
            tk -= _LANE

    # Guarantee >= 2 grid steps along the batch axis when there is enough work,
    # so both of v7x's TensorCores get a share (neutral on single-TC v5e/v6e).
    if B >= 16:
        tm = min(tm, _round_up(pl.cdiv(B, 2), _SUBLANE))
    if B <= tm:
        tm = B                                   # block == full array dim: always legal
    return tm, tk


# ---- kernels ----------------------------------------------------------------
def _fused_linear(x, w_ref, b_ref, o_ref, acc_ref):
    """Accumulate one K tile of x @ W^T into acc; add bias and store on last K."""
    k = pl.program_id(1)

    @pl.when(k == 0)
    def _():
        acc_ref[...] = jnp.zeros_like(acc_ref)

    if x.dtype != w_ref.dtype:                   # trace-time check: at most one cast
        x = x.astype(w_ref.dtype)
    acc_ref[...] += lax.dot_general(
        x, w_ref[...],
        dimension_numbers=(((1,), (1,)), ((), ())),   # contract H with H (W is (C, H))
        preferred_element_type=jnp.float32,
    )

    @pl.when(k == pl.num_programs(1) - 1)
    def _():
        o_ref[...] = (acc_ref[...] + b_ref[...].astype(jnp.float32)).astype(o_ref.dtype)


def _linear_kernel(x_ref, w_ref, b_ref, o_ref, acc_ref):
    """Eval path: dropout is the identity -> logits = x @ W^T + b."""
    _fused_linear(x_ref[...], w_ref, b_ref, o_ref, acc_ref)


def _dropout_linear_kernel(x_ref, mask_ref, w_ref, b_ref, o_ref, acc_ref):
    """Training path: inverted dropout (pre-scaled keep mask) fused with the linear."""
    _fused_linear(x_ref[...] * mask_ref[...], w_ref, b_ref, o_ref, acc_ref)


# ---- wrapper ----------------------------------------------------------------
def _dropout_mask(rng, shape, p, dtype):
    """Pre-scaled inverted-dropout keep mask: 0 or 1/(1-p)."""
    keep = jax.random.bernoulli(rng, 1.0 - p, shape)
    return keep.astype(dtype) * jnp.asarray(1.0 / (1.0 - p), dtype)


def ffnn_forward(x, weight, bias, *, dropout_rate=0.1, training=False,
                 rng=None, vmem_budget_bytes=_X_STREAM_BUDGET):
    """x: (B, 1, H); weight: (C, H) as in nn.Linear; bias: (C,). Returns (B, C)."""
    x2d = jnp.squeeze(x, axis=1)                 # (B, H) -- glue reshape, free in XLA
    B, H = x2d.shape
    C = weight.shape[0]

    # ---- operand dtypes (weight cast hoisted out of the kernel, done once) ----
    use_bf16_mxu = (x2d.dtype == jnp.float32 and H >= 256 and C >= 128)
    if use_bf16_mxu or x2d.dtype == jnp.bfloat16 or weight.dtype == jnp.bfloat16:
        compute_dtype = jnp.bfloat16
    else:
        compute_dtype = x2d.dtype
    w = weight if weight.dtype == jnp.dtype(compute_dtype) else weight.astype(compute_dtype)
    b2d = bias.reshape(1, C).astype(jnp.float32)

    # ---- dropout mask (host-side; see TODO above about pltpu.prng_random_bits) ----
    apply_dropout = training and dropout_rate > 0.0
    mask = None
    if apply_dropout:
        if rng is None:
            rng = jax.random.PRNGKey(0)
        mask = _dropout_mask(rng, (B, H), float(dropout_rate), x2d.dtype)

    # ---- tiling ----------------------------------------------------------------
    x_item = jnp.dtype(x2d.dtype).itemsize
    tm, tk = _choose_tiles(B, H, x_item, apply_dropout, vmem_budget_bytes)
    grid = (pl.cdiv(B, tm), pl.cdiv(H, tk))

    x_spec = pl.BlockSpec((tm, tk), lambda i, k: (i, k))
    w_spec = pl.BlockSpec((C, tk), lambda i, k: (0, k))     # VMEM-resident when tk == H
    b_spec = pl.BlockSpec((1, C), lambda i, k: (0, 0))
    o_spec = pl.BlockSpec((tm, C), lambda i, k: (i, 0))
    # TODO(synk): C < 128 forces masked vst.msk partial stores; concatenate several
    # small heads (or emit a transposed (C, tm) result) if this shows in a profile.

    # ---- explicit VMEM budget so big tiles compile on v5e's 16 MiB default ----
    w_item = jnp.dtype(compute_dtype).itemsize
    est = (2 * tm * tk * x_item                               # x double buffer
           + (2 * tm * tk * x_item if apply_dropout else 0)   # mask double buffer
           + 2 * C * tk * w_item                              # weight (dbl-buf if K grid)
           + 2 * C * 4                                        # bias
           + 2 * tm * C * x_item                              # output double buffer
           + tm * C * 4)                                      # f32 accumulator scratch
    vmem_limit = int(min(128 << 20, max(16 << 20, est + est // 4 + (4 << 20))))

    cparams = pltpu.CompilerParams(
        dimension_semantics=("parallel", "arbitrary"),
        vmem_limit_bytes=vmem_limit,
    )
    out_shape = jax.ShapeDtypeStruct((B, C), x2d.dtype)
    scratch = [pltpu.VMEM((tm, C), jnp.float32)]

    if apply_dropout:
        return pl.pallas_call(
            _dropout_linear_kernel,
            out_shape=out_shape,
            grid=grid,
            in_specs=[x_spec, x_spec, w_spec, b_spec],
            out_specs=o_spec,
            scratch_shapes=scratch,
            compiler_params=cparams,
        )(x2d, mask, w, b2d)

    # Eval / p == 0 path: no mask stream at all on the hot inference path.
    return pl.pallas_call(
        _linear_kernel,
        out_shape=out_shape,
        grid=grid,
        in_specs=[x_spec, w_spec, b_spec],
        out_specs=o_spec,
        scratch_shapes=scratch,
        compiler_params=cparams,
    )(x2d, w, b2d)


def init_params(key, hidden_dim, num_classes):
    """Deterministic nn.Linear-style init (uniform(-1/sqrt(H), 1/sqrt(H)))."""
    kw, kb = jax.random.split(key)
    bound = 1.0 / (hidden_dim ** 0.5)
    weight = jax.random.uniform(kw, (num_classes, hidden_dim), jnp.float32, -bound, bound)
    bias = jax.random.uniform(kb, (num_classes,), jnp.float32, -bound, bound)
    return weight, bias


if __name__ == "__main__":
    # module config: {'class-number': 8, 'hidden-dimension': 32, 'dropout-rate': 0.1}
    batch, hidden_dim, num_classes, p = 2, 32, 8, 0.1

    key = jax.random.PRNGKey(0)
    kx, kp, kx2, kx3, kdrop = jax.random.split(key, 5)
    x = jax.random.normal(kx, (batch, 1, hidden_dim), dtype=jnp.float32)
    weight, bias = init_params(kp, hidden_dim, num_classes)

    def ref_fwd(xin, w, b, mask=None):
        x2 = jnp.squeeze(xin, axis=1)
        if mask is not None:
            x2 = x2 * mask
        return x2 @ w.T + b

    # Tolerance covers the TPU MXU's default-precision f32 passes (bf16 passes);
    # in interpret mode the match is essentially exact.
    tol = dict(atol=2e-2, rtol=2e-2)

    # 1) Toy eval (B=2, H=32, C=8): single grid step, dropout == identity.
    logits = ffnn_forward(x, weight, bias, dropout_rate=p, training=False)
    jax.block_until_ready(logits)
    assert logits.shape == (batch, num_classes)
    assert bool(jnp.allclose(logits, ref_fwd(x, weight, bias), **tol))

    # 2) Batched eval: exercises the batch grid (>= 2 steps per the v7x megacore rule)
    #    with the weight/bias blocks VMEM-resident across grid steps.
    big_b = 1024
    xb = jax.random.normal(kx2, (big_b, 1, hidden_dim), dtype=jnp.float32)
    logits_b = ffnn_forward(xb, weight, bias, dropout_rate=p, training=False)
    jax.block_until_ready(logits_b)
    assert logits_b.shape == (big_b, num_classes)
    assert bool(jnp.allclose(logits_b, ref_fwd(xb, weight, bias), **tol))

    # 3) K-grid path: a tiny VMEM budget forces tk < H and the f32 accumulator
    #    (pl.when init/finalize across the "arbitrary" reduction axis).
    kb, hb = 64, 512
    w2, b2 = init_params(kp, hb, num_classes)
    xk = jax.random.normal(kx3, (kb, 1, hb), dtype=jnp.float32)
    logits_k = ffnn_forward(xk, w2, b2, dropout_rate=p, training=False,
                            vmem_budget_bytes=64 * 1024)
    jax.block_until_ready(logits_k)
    assert logits_k.shape == (kb, num_classes)
    assert bool(jnp.allclose(logits_k, ref_fwd(xk, w2, b2), **tol))

    # 4) Training: fused inverted dropout.  The mask is reproducible from the same
    #    key, so the result is checked against a plain-JAX reference.
    logits_t = ffnn_forward(x, weight, bias, dropout_rate=p, training=True, rng=kdrop)
    jax.block_until_ready(logits_t)
    mask_ref = _dropout_mask(kdrop, (batch, hidden_dim), p, x.dtype)
    assert logits_t.shape == (batch, num_classes)
    assert bool(jnp.allclose(logits_t, ref_fwd(x, weight, bias, mask_ref), **tol))

    print("KERNEL_OK")
</pallas_src>

<mosaic_0001>
module attributes {stable_mosaic.version = 11 : i64} {
  func.func @_linear_kernel(%arg0: i32, %arg1: i32, %arg2: memref<2x32xf32, #tpu.memory_space<vmem>>, %arg3: memref<8x32xf32, #tpu.memory_space<vmem>>, %arg4: memref<1x8xf32, #tpu.memory_space<vmem>>, %arg5: memref<2x8xf32, #tpu.memory_space<vmem>>, %arg6: memref<2x8xf32, #tpu.memory_space<vmem>>) attributes {dimension_semantics = [#tpu.dimension_semantics<parallel>, #tpu.dimension_semantics<arbitrary>], iteration_bounds = array<i64: 1, 1>, scalar_prefetch = 0 : i64, scratch_operands = 1 : i64, tpu.core_type = #tpu.core_type<tc>, window_params = [{transform_indices = @transform_0, window_bounds = array<i64: 2, 32>}, {transform_indices = @transform_1, window_bounds = array<i64: 8, 32>}, {pipeline_mode = #tpu.pipeline_mode<synchronous>, transform_indices = @transform_2, window_bounds = array<i64: 1, 8>}, {transform_indices = @transform_3, window_bounds = array<i64: 2, 8>}]} {
    %c0 = arith.constant 0 : index
    %c0_0 = arith.constant 0 : index
    %0 = vector.load %arg2[%c0, %c0_0] : memref<2x32xf32, #tpu.memory_space<vmem>>, vector<2x32xf32>
    %c0_i32 = arith.constant 0 : i32
    %1 = arith.cmpi eq, %arg1, %c0_i32 : i32
    %2 = arith.extui %1 : i1 to i32
    %c0_i32_1 = arith.constant 0 : i32
    %3 = arith.cmpi ne, %2, %c0_i32_1 : i32
    scf.if %3 {
      %cst_10 = arith.constant 0.000000e+00 : f32
      %12 = vector.broadcast %cst_10 : f32 to vector<2x8xf32>
      %c0_11 = arith.constant 0 : index
      %c0_12 = arith.constant 0 : index
      %13 = vector.load %arg6[%c0_11, %c0_12] : memref<2x8xf32, #tpu.memory_space<vmem>>, vector<2x8xf32>
      tpu.vector_store %arg6[%c0_11, %c0_12], %12 {strides = array<i32>} : memref<2x8xf32, #tpu.memory_space<vmem>>, vector<2x8xf32>,
    } else {
    }
    %c0_2 = arith.constant 0 : index
    %c0_3 = arith.constant 0 : index
    %4 = vector.load %arg6[%c0_2, %c0_3] : memref<2x8xf32, #tpu.memory_space<vmem>>, vector<2x8xf32>
    %c0_4 = arith.constant 0 : index
    %c0_5 = arith.constant 0 : index
    %5 = vector.load %arg3[%c0_4, %c0_5] : memref<8x32xf32, #tpu.memory_space<vmem>>, vector<8x32xf32>
    %cst = arith.constant dense<0.000000e+00> : vector<2x8xf32>
    %6 = tpu.matmul %0, %5, %cst {dimension_numbers = #tpu.dot_dimension_numbers<[1], [1], [0], [0], [0, 0, 1, 0], [], []>} : vector<2x32xf32>, vector<8x32xf32>, vector<2x8xf32> -> vector<2x8xf32>
    %7 = arith.addf %4, %6 : vector<2x8xf32>
    %c0_6 = arith.constant 0 : index
    %c0_7 = arith.constant 0 : index
    %8 = vector.load %arg6[%c0_6, %c0_7] : memref<2x8xf32, #tpu.memory_space<vmem>>, vector<2x8xf32>
    tpu.vector_store %arg6[%c0_6, %c0_7], %7 {strides = array<i32>} : memref<2x8xf32, #tpu.memory_space<vmem>>, vector<2x8xf32>,
    %c0_i32_8 = arith.constant 0 : i32
    %9 = arith.cmpi eq, %arg1, %c0_i32_8 : i32
    %10 = arith.extui %9 : i1 to i32
    %c0_i32_9 = arith.constant 0 : i32
    %11 = arith.cmpi ne, %10, %c0_i32_9 : i32
    scf.if %11 {
      %c0_10 = arith.constant 0 : index
      %c0_11 = arith.constant 0 : index
      %12 = vector.load %arg6[%c0_10, %c0_11] : memref<2x8xf32, #tpu.memory_space<vmem>>, vector<2x8xf32>
      %c0_12 = arith.constant 0 : index
      %c0_13 = arith.constant 0 : index
      %13 = vector.load %arg4[%c0_12, %c0_13] : memref<1x8xf32, #tpu.memory_space<vmem>>, vector<1x8xf32>
      %14 = vector.broadcast %13 : vector<1x8xf32> to vector<2x8xf32>
      %15 = arith.addf %12, %14 : vector<2x8xf32>
      %c0_14 = arith.constant 0 : index
      %c0_15 = arith.constant 0 : index
      %16 = vector.load %arg5[%c0_14, %c0_15] : memref<2x8xf32, #tpu.memory_space<vmem>>, vector<2x8xf32>
      tpu.vector_store %arg5[%c0_14, %c0_15], %15 {strides = array<i32>} : memref<2x8xf32, #tpu.memory_space<vmem>>, vector<2x8xf32>,
    } else {
    }
    return
  }
  func.func @transform_0(%arg0: i32, %arg1: i32) -> (i32, i32) {
    %c0_i32 = arith.constant 0 : i32
    return %arg0, %arg1 : i32, i32
  }
  func.func @transform_1(%arg0: i32, %arg1: i32) -> (i32, i32) {
    %c0_i32 = arith.constant 0 : i32
    %c0_i32_0 = arith.constant 0 : i32
    return %c0_i32, %arg1 : i32, i32
  }
  func.func @transform_2(%arg0: i32, %arg1: i32) -> (i32, i32) {
    %c0_i32 = arith.constant 0 : i32
    %c0_i32_0 = arith.constant 0 : i32
    %c0_i32_1 = arith.constant 0 : i32
    return %c0_i32, %c0_i32_0 : i32, i32
  }
  func.func @transform_3(%arg0: i32, %arg1: i32) -> (i32, i32) {
    %c0_i32 = arith.constant 0 : i32
    %c0_i32_0 = arith.constant 0 : i32
    return %arg0, %c0_i32 : i32, i32
  }
}

</mosaic_0001>

<llo_original>
// kernel: tpu_custom_call.1
$region0: #{tpu_custom_call.1}
  #allocation0 [shape = 'u32[]', space=smem, size = 0x4, offset = 0x4, fixed_abs, tag = 'smem constant byte address 0x4 - core index']
  #allocation1 [shape = 'u32[144,128]{1,0:T(1,128)}', space=vmem, size = 0x12000, scoped, tag = 'internal scratch']
  #allocation2 [shape = 'f32[2,8]{1,0:T(2,128)}', space=vmem, size = 0x400, scoped, tag = 'scratch operand']
  %s0 = inlined_call_operand.hbm [shape: f32[2,32], index: 0, kind: input, shape index: {}]
  %s1 = inlined_call_operand.hbm [shape: f32[8,32], index: 1, kind: input, shape index: {}]
  %s2 = inlined_call_operand.vmem [shape: f32[1,8], index: 2, kind: input, shape index: {}]
  %s3 = inlined_call_operand.hbm [shape: f32[2,8], index: 3, kind: output, shape index: {}]
  %s4 = sld [smem:[#allocation0]]
  $region38: #{tpu_custom_call.1} parent=0
    _
  %s6 = ssub.s32 1, %s4
  %s7 = scalar_select 0, %s6, %s4
  $region1: #{tpu_custom_call.1} parent=0
    #allocation3 [shape = 'u8[1024]{0}', space=vmem, size = 0x400, scoped, tag = 'input window, operand 0, single buffered']
    #allocation4 [shape = 's32[1]{0}', space=sflag, size = 0x4, scoped, tag = 'scoped memory for tpu_custom_call.1']
    #allocation5 [shape = 's32[1]{0}', space=sflag, size = 0x4, scoped, tag = 'scoped memory for tpu_custom_call.1']
    #allocation6 [shape = 'u8[4096]{0}', space=vmem, size = 0x1000, scoped, tag = 'input window, operand 1, single buffered']
    #allocation7 [shape = 's32[1]{0}', space=sflag, size = 0x4, scoped, tag = 'scoped memory for tpu_custom_call.1']
    #allocation8 [shape = 'u8[1024]{0}', space=vmem, size = 0x400, scoped, tag = 'output window, operand 0, single buffered']
    %8 = vsyncpa [#allocation4], 0
    %9 = vsyncpa [#allocation7], 0
    %10 = vsyncpa [#allocation5], 0
    // Predicated region
    $region2: #{tpu_custom_call.1} parent=1 // pred_check
      _
    $region3: #{tpu_custom_call.1} parent=1 // pred_check_branch
      %12 = sbr.rel (0) target = $region5
    $region4: #{tpu_custom_call.1} parent=1 // pred_region
      %s14 = ssub.s32 32, 32
      %15 = vsyncadd [#allocation4], %s14
      %s17 = sshll.u32 [#allocation3], 4
      %s18 = int_to_ptr.vmem [resolvable:$true] %s17
      %20 = dma.hbm_to_vmem [thread:$0]  %s0, 32, %s18, [#allocation4]
    $region5: #{tpu_custom_call.1} parent=1 // pred_fallthru
      _
    // Predicated region
    $region6: #{tpu_custom_call.1} parent=1 // pred_check
      _
    $region7: #{tpu_custom_call.1} parent=1 // pred_check_branch
      %22 = sbr.rel (0) target = $region9
    $region8: #{tpu_custom_call.1} parent=1 // pred_region
      %s24 = ssub.s32 128, 128
      %25 = vsyncadd [#allocation7], %s24
      %s27 = sshll.u32 [#allocation6], 4
      %s28 = int_to_ptr.vmem [resolvable:$true] %s27
      %30 = dma.hbm_to_vmem [thread:$0]  %s1, 128, %s28, [#allocation7]
    $region9: #{tpu_custom_call.1} parent=1 // pred_fallthru
      _
    // Predicated region
    $region10: #{tpu_custom_call.1} parent=1 // pred_check
      _
    $region11: #{tpu_custom_call.1} parent=1 // pred_check_branch
      %32 = sbr.rel (0) target = $region13
    $region12: #{tpu_custom_call.1} parent=1 // pred_region
      _
    $region13: #{tpu_custom_call.1} parent=1 // pred_fallthru
      _
    // Predicated region
    $region14: #{tpu_custom_call.1} parent=1 // pred_check
      _
    $region15: #{tpu_custom_call.1} parent=1 // pred_check_branch
      %34 = sbr.rel (0) target = $region17
    $region16: #{tpu_custom_call.1} parent=1 // pred_region
      %35 = dma.done [#allocation4], 32
    $region17: #{tpu_custom_call.1} parent=1 // pred_fallthru
      _
    // Predicated region
    $region18: #{tpu_custom_call.1} parent=1 // pred_check
      _
    $region19: #{tpu_custom_call.1} parent=1 // pred_check_branch
      %37 = sbr.rel (0) target = $region21
    $region20: #{tpu_custom_call.1} parent=1 // pred_region
      %38 = dma.done [#allocation7], 128
    $region21: #{tpu_custom_call.1} parent=1 // pred_fallthru
      _
    %v39 = vld [vmem:[#allocation3] sm:$0x3]
    %p40 = scmp.eq.s32.totalorder 0, 0
    // Predicated region
    $region22: #{tpu_custom_call.1} parent=1 // pred_check
      %p41 = pneg %p40
    $region23: #{tpu_custom_call.1} parent=1 // pred_check_branch
      %43 = sbr.rel (%p41) target = $region25
    $region24: #{tpu_custom_call.1} parent=1 // pred_region
      %vm44 = vcmask 58368
      %45 = vst.msk [vmem:[#allocation2] sm:$0x3] %vm44, 0.0
    $region25: #{tpu_custom_call.1} parent=1 // pred_fallthru
      _
    %v46 = vld [vmem:[#allocation2] sm:$0x3]
    %v47 = vld [vmem:[#allocation6] sm:$0xff]
    %vm48 = vcmask 261120
    %v50 = vsel %vm48, %v39, 0
    %v53 = vsel %vm48, %v47, 0
    %55 = vmatprep.subr.mxu0 0.0
    %56 = vmatpush1.xpose.msra.mxu0 %v53
    %57 = vmatprep.subr.mxu0 0.0
    %58 = vmatpush1.xpose.msra.mxu0 0.0
    %59 = vmatprep.subr.mxu0 0.0
    %60 = vmatpush1.xpose.msra.mxu0 0.0
    %61 = vmatprep.subr.mxu0 0.0
    %62 = vmatpush1.xpose.msra.mxu0 0.0
    %63 = vmatprep.subr.mxu0 0.0
    %64 = vmatpush1.xpose.msra.mxu0 0.0
    %65 = vmatprep.subr.mxu0 0.0
    %66 = vmatpush1.xpose.msra.mxu0 0.0
    %67 = vmatprep.subr.mxu0 0.0
    %68 = vmatpush1.xpose.msra.mxu0 0.0
    %69 = vmatprep.subr.mxu0 0.0
    %70 = vmatpush1.xpose.msra.mxu0 0.0
    %71 = vmatprep.subr.mxu0 0.0
    %72 = vmatpush1.xpose.msra.mxu0 0.0
    %73 = vmatprep.subr.mxu0 0.0
    %74 = vmatpush1.xpose.msra.mxu0 0.0
    %75 = vmatprep.subr.mxu0 0.0
    %76 = vmatpush1.xpose.msra.mxu0 0.0
    %77 = vmatprep.subr.mxu0 0.0
    %78 = vmatpush1.xpose.msra.mxu0 0.0
    %79 = vmatprep.subr.mxu0 0.0
    %80 = vmatpush1.xpose.msra.mxu0 0.0
    %81 = vmatprep.subr.mxu0 0.0
    %82 = vmatpush1.xpose.msra.mxu0 0.0
    %83 = vmatprep.subr.mxu0 0.0
    %84 = vmatpush1.xpose.msra.mxu0 0.0
    %85 = vmatprep.subr.mxu0 0.0
    %86 = vmatpush1.xpose.msra.mxu0 0.0
    %87 = vmatprep.subr.mxu0 0.0
    %88 = vmatpush1.xpose.msra.mxu0 0.0
    %89 = vmatprep.subr.mxu0 0.0
    %90 = vmatpush1.xpose.msra.mxu0 0.0
    %91 = vmatprep.subr.mxu0 0.0
    %92 = vmatpush1.xpose.msra.mxu0 0.0
    %93 = vmatprep.subr.mxu0 0.0
    %94 = vmatpush1.xpose.msra.mxu0 0.0
    %95 = vmatprep.subr.mxu0 0.0
    %96 = vmatpush1.xpose.msra.mxu0 0.0
    %97 = vmatprep.subr.mxu0 0.0
    %98 = vmatpush1.xpose.msra.mxu0 0.0
    %99 = vmatprep.subr.mxu0 0.0
    %100 = vmatpush1.xpose.msra.mxu0 0.0
    %101 = vmatprep.subr.mxu0 0.0
    %102 = vmatpush1.xpose.msra.mxu0 0.0
    %103 = vmatprep.subr.mxu0 0.0
    %104 = vmatpush1.xpose.msra.mxu0 0.0
    %105 = vmatprep.subr.mxu0 0.0
    %106 = vmatpush1.xpose.msra.mxu0 0.0
    %107 = vmatprep.subr.mxu0 0.0
    %108 = vmatpush1.xpose.msra.mxu0 0.0
    %109 = vmatprep.subr.mxu0 0.0
    %110 = vmatpush1.xpose.msra.mxu0 0.0
    %111 = vmatprep.subr.mxu0 0.0
    %112 = vmatpush1.xpose.msra.mxu0 0.0
    %113 = vmatprep.subr.mxu0 0.0
    %114 = vmatpush1.xpose.msra.mxu0 0.0
    %115 = vmatprep.subr.mxu0 0.0
    %116 = vmatpush1.xpose.msra.mxu0 0.0
    %117 = vmatprep.subr.mxu0 0.0
    %118 = vmatpush1.xpose.msra.mxu0 0.0
    %119 = vmatprep.mubr.f32.mxu0 0.0
    %120 = vmatmul.mubr.f32.gmra.mrb[0].mxu0 %v50
    %v121 = vpop.f32.mrb[0].mxu0
    %v122 = vadd.f32 0.0, %v121
    %v123 = vpop.f32.mrb[0].mxu0
    %124 = vdwg.mxu0
    %v125 = vadd.f32 %v46, %v122
    %vm126 = vcmask 58368
    %127 = vst.msk [vmem:[#allocation2] sm:$0x3] %vm126, %v125
    // Predicated region
    $region26: #{tpu_custom_call.1} parent=1 // pred_check
      %p128 = pneg %p40
    $region27: #{tpu_custom_call.1} parent=1 // pred_check_branch
      %130 = sbr.rel (%p128) target = $region29
    $region28: #{tpu_custom_call.1} parent=1 // pred_region
      %v131 = vld [vmem:[#allocation2] sm:$0x3]
      %v132 = vld [vmem:[%s2] sm:$0x1]
      %v134 = vlaneseq
      %v135 = vshrl.u32 %v134, 7
      %v136 = vsub.s32 0, %v135
      %v137 = vrot.slane %v132, %v136
      %v139 = vadd.f32 %v131, %v137
      %140 = vst.msk [vmem:[#allocation8] sm:$0x3] %vm126, %v139
    $region29: #{tpu_custom_call.1} parent=1 // pred_fallthru
      _
    // Predicated region
    $region30: #{tpu_custom_call.1} parent=1 // pred_check
      _
    $region31: #{tpu_custom_call.1} parent=1 // pred_check_branch
      %142 = sbr.rel (0) target = $region33
    $region32: #{tpu_custom_call.1} parent=1 // pred_region
      %s144 = ssub.s32 32, 32
      %145 = vsyncadd [#allocation5], %s144
      %s147 = sshll.u32 [#allocation8], 4
      %s148 = int_to_ptr.vmem [resolvable:$true] %s147
      %150 = dma.vmem_to_hbm [thread:$0]  %s148, 32, %s3, [#allocation5]
    $region33: #{tpu_custom_call.1} parent=1 // pred_fallthru
      _
    // Predicated region
    $region34: #{tpu_custom_call.1} parent=1 // pred_check
      _
    $region35: #{tpu_custom_call.1} parent=1 // pred_check_branch
      %152 = sbr.rel (0) target = $region37
    $region36: #{tpu_custom_call.1} parent=1 // pred_region
      %153 = dma.done [#allocation5], 32
    $region37: #{tpu_custom_call.1} parent=1 // pred_fallthru
      _
    %154 = vsyncpa [#allocation4], 1
    %155 = vsyncpa [#allocation7], 1
    %156 = vsyncpa [#allocation5], 1

</llo_original>
